<compile_context>
chip_gen: v5e
topology: v5e:2x2
jax: 0.10.0
libtpu: 0.0.40
codegen_flags: <defaults>
</compile_context>

<pallas_src>
import jax
import jax.numpy as jnp
from jax import lax
from jax.experimental import pallas as pl
from jax.experimental.pallas import tpu as pltpu

EPS = 1e-5
NEG_SLOPE = 0.01


# --------------------------- Pallas kernel --------------------------------- #
def _fused_conv_in_lrelu_kernel(w_ref, p_ref, o_ref):
    # w_ref: (Cout, K)       weights, rows = output channel, cols = (k..., cin)
    # p_ref: (1, K, M)       im2col / space-to-depth patch slab for one sample
    # o_ref: (1, Cout, M)    lane-dense output (M = spatial volume in lanes)
    #
    # One MXU matmul with f32 accumulation, then fused single-pass
    # InstanceNorm (biased variance, affine=False) + LeakyReLU(0.01).
    acc = jnp.dot(w_ref[...], p_ref[0],
                  preferred_element_type=jnp.float32)          # (Cout, M) f32
    m = acc.shape[1]
    inv_m = 1.0 / m
    s = jnp.sum(acc, axis=1, keepdims=True)                    # lane reduce
    ss = jnp.sum(acc * acc, axis=1, keepdims=True)
    mean = s * inv_m
    var = jnp.maximum(ss * inv_m - mean * mean, 0.0)
    y = (acc - mean) * lax.rsqrt(var + EPS)                    # EUP rsqrt
    y = jnp.where(y >= 0, y, NEG_SLOPE * y)
    o_ref[0] = y.astype(o_ref.dtype)


def _fused_stage(p_slab, w2d, out_dtype):
    # p_slab: (N, K, M)  w2d: (Cout, K)  ->  (N, Cout, M)
    N, K, M = p_slab.shape
    Cout = w2d.shape[0]
    return pl.pallas_call(
        _fused_conv_in_lrelu_kernel,
        out_shape=jax.ShapeDtypeStruct((N, Cout, M), out_dtype),
        grid=(N,),
        in_specs=[
            pl.BlockSpec((Cout, K), lambda n: (0, 0)),
            pl.BlockSpec((1, K, M), lambda n: (n, 0, 0)),
        ],
        out_specs=pl.BlockSpec((1, Cout, M), lambda n: (n, 0, 0)),
        compiler_params=pltpu.CompilerParams(
            dimension_semantics=("parallel",),
            vmem_limit_bytes=64 * 1024 * 1024,
        ),
    )(w2d, p_slab)


# --------------------------- wrapper glue (XLA) ----------------------------- #
def _im2col_3x3x3(x_ncm, D, H, W, compute_dtype):
    # (N, Cin, D*H*W) -> (N, 27*Cin, D*H*W); rows ordered (kd, kh, kw, cin);
    # 'same' padding with zeros (Conv3d k=3, s=1, p=1).
    N, Cin, M = x_ncm.shape
    xp = jnp.pad(x_ncm.reshape(N, Cin, D, H, W),
                 ((0, 0), (0, 0), (1, 1), (1, 1), (1, 1)))
    cols = []
    for kd in range(3):
        for kh in range(3):
            for kw in range(3):
                cols.append(
                    xp[:, :, kd:kd + D, kh:kh + H, kw:kw + W].reshape(N, Cin, M))
    return jnp.concatenate(cols, axis=1).astype(compute_dtype)


def _space_to_depth2(x_ncm, D, H, W, compute_dtype):
    # Stride-2 / kernel-2 im2col: (N, C, D*H*W) -> (N, 8*C, (D/2)(H/2)(W/2));
    # rows ordered (kd, kh, kw, c). Pure relayout: total bytes unchanged.
    N, C, M = x_ncm.shape
    Do, Ho, Wo = D // 2, H // 2, W // 2
    xr = x_ncm.reshape(N, C, Do, 2, Ho, 2, Wo, 2)
    xr = jnp.transpose(xr, (0, 3, 5, 7, 1, 2, 4, 6))  # (N, kd, kh, kw, C, Do, Ho, Wo)
    return xr.reshape(N, 8 * C, Do * Ho * Wo).astype(compute_dtype)


def _flatten_weight(w, compute_dtype):
    # torch (Cout, Cin, kd, kh, kw) -> (Cout, kd*kh*kw*Cin)
    Cout = w.shape[0]
    return jnp.transpose(w, (0, 2, 3, 4, 1)).reshape(Cout, -1).astype(compute_dtype)


def shared_encoder_forward(x_ncdhw, params, compute_dtype=jnp.bfloat16):
    """Pallas SharedEncoder forward. Input / outputs are NCDHW (PyTorch layout).

    compute_dtype: MXU operand dtype (bf16 recommended on v6e/v7x; use f32 for
    tight parity). Accumulation and InstanceNorm statistics are always f32.
    Conv biases (params b1/b2/b3) are accepted but unused — they cancel exactly
    under the affine-free InstanceNorm that follows each conv.
    """
    N, Cin, D, H, W = x_ncdhw.shape
    out_dtype = x_ncdhw.dtype
    x = x_ncdhw.reshape(N, Cin, D * H * W)            # lane-dense (C, M) layout

    # stage 1: conv3x3x3 s1 p1 -> IN -> LReLU
    p1 = _im2col_3x3x3(x, D, H, W, compute_dtype)
    x1 = _fused_stage(p1, _flatten_weight(params["w1"], compute_dtype), out_dtype)

    # stage 2: conv2x2x2 s2 -> IN -> LReLU
    p2 = _space_to_depth2(x1, D, H, W, compute_dtype)
    x2 = _fused_stage(p2, _flatten_weight(params["w2"], compute_dtype), out_dtype)

    # stage 3: conv2x2x2 s2 -> IN -> LReLU
    D2, H2, W2 = D // 2, H // 2, W // 2
    p3 = _space_to_depth2(x2, D2, H2, W2, compute_dtype)
    x3 = _fused_stage(p3, _flatten_weight(params["w3"], compute_dtype), out_dtype)

    # (N, C, M) -> NCDHW is a free, contiguous reshape.
    C1, C2, C3 = x1.shape[1], x2.shape[1], x3.shape[1]
    return (x1.reshape(N, C1, D, H, W),
            x2.reshape(N, C2, D2, H2, W2),
            x3.reshape(N, C3, D // 4, H // 4, W // 4))


# ----------------------- pure-JAX reference (checking) ---------------------- #
def _ref_conv_in_lrelu(x, w, b, stride, padding):
    dn = ("NCDHW", "OIDHW", "NCDHW")
    y = lax.conv_general_dilated(x, w, (stride,) * 3,
                                 [(padding, padding)] * 3,
                                 dimension_numbers=dn)
    y = y + b[None, :, None, None, None]
    mean = jnp.mean(y, axis=(2, 3, 4), keepdims=True)
    var = jnp.mean((y - mean) ** 2, axis=(2, 3, 4), keepdims=True)
    y = (y - mean) * lax.rsqrt(var + EPS)
    return jnp.where(y >= 0, y, NEG_SLOPE * y)


def shared_encoder_reference(x, params):
    x1 = _ref_conv_in_lrelu(x, params["w1"], params["b1"], stride=1, padding=1)
    x2 = _ref_conv_in_lrelu(x1, params["w2"], params["b2"], stride=2, padding=0)
    x3 = _ref_conv_in_lrelu(x2, params["w3"], params["b3"], stride=2, padding=0)
    return x1, x2, x3


if __name__ == "__main__":
    key = jax.random.PRNGKey(0)
    k_x, k1, k2, k3, kb1, kb2, kb3 = jax.random.split(key, 7)

    N, Cin, D, H, W = 2, 1, 16, 16, 16
    base = 8  # base_dim (kept small; module default is 32)

    x = jax.random.normal(k_x, (N, Cin, D, H, W), jnp.float32)
    params = {
        "w1": 0.1 * jax.random.normal(k1, (base, Cin, 3, 3, 3), jnp.float32),
        "b1": 0.1 * jax.random.normal(kb1, (base,), jnp.float32),
        "w2": 0.1 * jax.random.normal(k2, (base * 2, base, 2, 2, 2), jnp.float32),
        "b2": 0.1 * jax.random.normal(kb2, (base * 2,), jnp.float32),
        "w3": 0.1 * jax.random.normal(k3, (base * 4, base * 2, 2, 2, 2), jnp.float32),
        "b3": 0.1 * jax.random.normal(kb3, (base * 4,), jnp.float32),
    }

    expected_shapes = [(N, base, D, H, W),
                       (N, base * 2, D // 2, H // 2, W // 2),
                       (N, base * 4, D // 4, H // 4, W // 4)]

    refs = jax.block_until_ready(shared_encoder_reference(x, params))

    # 1) f32-operand path: tight parity with the f32 reference.
    outs_f32 = jax.block_until_ready(
        shared_encoder_forward(x, params, compute_dtype=jnp.float32))
    for o, r, s in zip(outs_f32, refs, expected_shapes):
        assert o.shape == s, (o.shape, s)
        err = float(jnp.max(jnp.abs(o - r)))
        assert err < 1e-3, err

    # 2) bf16-operand path (perf configuration for v6e/v7x): f32 accumulation,
    #    so only operand-quantization error remains; loose tolerance.
    outs_bf16 = jax.block_until_ready(
        shared_encoder_forward(x, params, compute_dtype=jnp.bfloat16))
    for o, r, s in zip(outs_bf16, refs, expected_shapes):
        assert o.shape == s, (o.shape, s)
        err = float(jnp.max(jnp.abs(o - r)))
        assert err < 2.5e-1, err

    print("KERNEL_OK")
</pallas_src>

<mosaic_0001>
module attributes {stable_mosaic.version = 11 : i64} {
  func.func @_fused_conv_in_lrelu_kernel(%arg0: i32, %arg1: memref<8x27xf32, #tpu.memory_space<vmem>>, %arg2: memref<1x27x4096xf32, #tpu.memory_space<vmem>>, %arg3: memref<1x8x4096xf32, #tpu.memory_space<vmem>>) attributes {dimension_semantics = [#tpu.dimension_semantics<parallel>], iteration_bounds = array<i64: 2>, scalar_prefetch = 0 : i64, scratch_operands = 0 : i64, tpu.core_type = #tpu.core_type<tc>, window_params = [{pipeline_mode = #tpu.pipeline_mode<synchronous>, transform_indices = @transform_0, window_bounds = array<i64: 8, 27>}, {transform_indices = @transform_1, window_bounds = array<i64: 1, 27, 4096>}, {transform_indices = @transform_2, window_bounds = array<i64: 1, 8, 4096>}]} {
    %c0 = arith.constant 0 : index
    %c0_0 = arith.constant 0 : index
    %0 = vector.load %arg1[%c0, %c0_0] : memref<8x27xf32, #tpu.memory_space<vmem>>, vector<8x27xf32>
    %c0_1 = arith.constant 0 : index
    %c0_2 = arith.constant 0 : index
    %c0_3 = arith.constant 0 : index
    %1 = vector.load %arg2[%c0_1, %c0_2, %c0_3] : memref<1x27x4096xf32, #tpu.memory_space<vmem>>, vector<1x27x4096xf32>
    %2 = vector.shape_cast %1 : vector<1x27x4096xf32> to vector<27x4096xf32>
    %cst = arith.constant dense<0.000000e+00> : vector<8x4096xf32>
    %3 = tpu.matmul %0, %2, %cst {dimension_numbers = #tpu.dot_dimension_numbers<[1], [0], [0], [1], [0, 0, 1, 1], [], []>} : vector<8x27xf32>, vector<27x4096xf32>, vector<8x4096xf32> -> vector<8x4096xf32>
    %cst_4 = arith.constant dense<0.000000e+00> : vector<8xf32>
    %4 = vector.multi_reduction <add>, %3, %cst_4 [1] : vector<8x4096xf32> to vector<8xf32>
    %5 = vector.shape_cast %4 : vector<8xf32> to vector<8x1xf32>
    %6 = arith.mulf %3, %3 : vector<8x4096xf32>
    %cst_5 = arith.constant dense<0.000000e+00> : vector<8xf32>
    %7 = vector.multi_reduction <add>, %6, %cst_5 [1] : vector<8x4096xf32> to vector<8xf32>
    %8 = vector.shape_cast %7 : vector<8xf32> to vector<8x1xf32>
    %cst_6 = arith.constant 2.44140625E-4 : f32
    %9 = vector.broadcast %cst_6 : f32 to vector<8x1xf32>
    %10 = arith.mulf %5, %9 : vector<8x1xf32>
    %cst_7 = arith.constant 2.44140625E-4 : f32
    %11 = vector.broadcast %cst_7 : f32 to vector<8x1xf32>
    %12 = arith.mulf %8, %11 : vector<8x1xf32>
    %13 = arith.mulf %10, %10 : vector<8x1xf32>
    %14 = arith.subf %12, %13 : vector<8x1xf32>
    %cst_8 = arith.constant 0.000000e+00 : f32
    %15 = vector.broadcast %cst_8 : f32 to vector<8x1xf32>
    %16 = arith.maximumf %14, %15 : vector<8x1xf32>
    %17 = vector.broadcast %10 : vector<8x1xf32> to vector<8x4096xf32>
    %18 = arith.subf %3, %17 : vector<8x4096xf32>
    %cst_9 = arith.constant 9.99999974E-6 : f32
    %19 = vector.broadcast %cst_9 : f32 to vector<8x1xf32>
    %20 = arith.addf %16, %19 : vector<8x1xf32>
    %21 = math.rsqrt %20 : vector<8x1xf32>
    %22 = vector.broadcast %21 : vector<8x1xf32> to vector<8x4096xf32>
    %23 = arith.mulf %18, %22 : vector<8x4096xf32>
    %cst_10 = arith.constant 0.000000e+00 : f32
    %24 = vector.broadcast %cst_10 : f32 to vector<8x4096xf32>
    %25 = arith.cmpf oge, %23, %24 : vector<8x4096xf32>
    %cst_11 = arith.constant 0.00999999977 : f32
    %26 = vector.broadcast %cst_11 : f32 to vector<8x4096xf32>
    %27 = arith.mulf %26, %23 : vector<8x4096xf32>
    %28 = arith.select %25, %23, %27 : vector<8x4096xi1>, vector<8x4096xf32>
    %c0_12 = arith.constant 0 : index
    %c0_13 = arith.constant 0 : index
    %c0_14 = arith.constant 0 : index
    %29 = vector.load %arg3[%c0_12, %c0_13, %c0_14] : memref<1x8x4096xf32, #tpu.memory_space<vmem>>, vector<1x8x4096xf32>
    %30 = vector.shape_cast %29 : vector<1x8x4096xf32> to vector<8x4096xf32>
    %31 = vector.shape_cast %28 : vector<8x4096xf32> to vector<1x8x4096xf32>
    tpu.vector_store %arg3[%c0_12, %c0_13, %c0_14], %31 {strides = array<i32>} : memref<1x8x4096xf32, #tpu.memory_space<vmem>>, vector<1x8x4096xf32>,
    return
  }
  func.func @transform_0(%arg0: i32) -> (i32, i32) {
    %c0_i32 = arith.constant 0 : i32
    %c0_i32_0 = arith.constant 0 : i32
    %c0_i32_1 = arith.constant 0 : i32
    return %c0_i32, %c0_i32_0 : i32, i32
  }
  func.func @transform_1(%arg0: i32) -> (i32, i32, i32) {
    %c0_i32 = arith.constant 0 : i32
    %c0_i32_0 = arith.constant 0 : i32
    %c0_i32_1 = arith.constant 0 : i32
    return %arg0, %c0_i32, %c0_i32_0 : i32, i32, i32
  }
  func.func @transform_2(%arg0: i32) -> (i32, i32, i32) {
    %c0_i32 = arith.constant 0 : i32
    %c0_i32_0 = arith.constant 0 : i32
    %c0_i32_1 = arith.constant 0 : i32
    return %arg0, %c0_i32, %c0_i32_0 : i32, i32, i32
  }
}

</mosaic_0001>

<llo_original>
// kernel: tpu_custom_call.1
$region0: #{tpu_custom_call.1}
  #allocation0 [shape = 'u32[]', space=smem, size = 0x4, offset = 0x4, fixed_abs, tag = 'smem constant byte address 0x4 - core index']
  #allocation1 [shape = 'u32[72,128]{1,0:T(1,128)}', space=vmem, size = 0x9000, scoped, tag = 'internal scratch']
  %s0 = inlined_call_operand.vmem [shape: f32[8,27], index: 0, kind: input, shape index: {}]
  %s1 = inlined_call_operand.vmem [shape: f32[2,27,4096], index: 1, kind: input, shape index: {}]
  %s2 = inlined_call_operand.hbm [shape: f32[2,8,4096], index: 2, kind: output, shape index: {}]
  %s3 = sld [smem:[#allocation0]]
  $region41: #{tpu_custom_call.1} parent=0
    _
  %s5 = ssub.s32 1, %s3
  %s6 = scalar_select 0, %s5, %s3
  $region1: #{tpu_custom_call.1} parent=0
    #allocation2 [shape = 'u8[262144]{0}', space=vmem, size = 0x40000, scoped, tag = 'output window, operand 0']
    #allocation3 [shape = 's32[2]{0}', space=sflag, size = 0x8, scoped, tag = 'scoped memory for tpu_custom_call.1']
    %7 = vsyncpa [#allocation3], 0
    %s8 = scalar_lea.sflag [#allocation3], 1
    %9 = vsyncpa %s8, 0
    loop: start=0, step=1, limit=4
    $region2: #{tpu_custom_call.1} parent=1 // loop_pre_header
      _
    $region3: #{tpu_custom_call.1} parent=1 // loop_header
      %s11 = sphi 0, %s15
      %p12 = scmp.ge.s32.totalorder %s11, 4
      %s19 = sphi 0, %s19
      %s21 = sphi 0, %s19
      %s22 = sphi 0, %s21
      %s36 = sphi 0, %s22
      %s42 = sphi 0, %s44
      %s45 = sphi 0, %s42
      %s46 = sphi 0, %s45
      %s62 = sphi 0, %s46
      %s68 = sphi 0, %s70
      %s71 = sphi 0, %s68
      %s72 = sphi 0, %s71
      %s88 = sphi 0, %s72
    $region4: #{tpu_custom_call.1} parent=1 // loop_header_branch
      %14 = sbr.rel (%p12) target = $region8
    $region5: #{tpu_custom_call.1} parent=1 // loop_body
      %s16 = ssub.s32 %s11, 1
      %s17 = ssub.s32 %s11, 2
      %s18 = sadd.s32 %s11, 1
      %s20 = sadd.s32 %s19, 1
      %p23 = scmp.eq.s32.totalorder %s11, 1
      %p24 = scmp.ne.s32.totalorder %s19, %s21
      %p25 = scmp.eq.s32.totalorder %s11, 0
      %p26 = por %p24, %p25
      %p27 = scmp.ne.s32.totalorder %s19, %s21
      %p28 = scmp.eq.s32.totalorder %s16, 1
      %p29 = por %p27, %p28
      %p30 = scmp.ne.s32.totalorder %s21, %s22
      %p31 = scmp.eq.s32.totalorder %s16, 0
      %p32 = por %p30, %p31
      %p33 = scmp.ne.s32.totalorder %s21, %s22
      %p34 = scmp.eq.s32.totalorder %s17, 1
      %p35 = por %p33, %p34
      %p37 = scmp.ne.s32.totalorder %s22, %s36
      %p38 = scmp.eq.s32.totalorder %s17, 0
      %p39 = por %p37, %p38
      %s40 = ssub.s32 %s11, %s18
      %p41 = scmp.eq.s32.totalorder %s40, 0
      %s43 = sadd.s32 %s42, 1
      %s44 = scalar_select %p41, %s42, %s43
      %p47 = pneg %p41
      %p48 = scmp.eq.s32.totalorder %s11, 1
      %p49 = por %p47, %p48
      %p50 = scmp.ne.s32.totalorder %s42, %s45
      %p51 = scmp.eq.s32.totalorder %s11, 0
      %p52 = por %p50, %p51
      %p53 = scmp.ne.s32.totalorder %s42, %s45
      %p54 = scmp.eq.s32.totalorder %s16, 1
      %p55 = por %p53, %p54
      %p56 = scmp.ne.s32.totalorder %s45, %s46
      %p57 = scmp.eq.s32.totalorder %s16, 0
      %p58 = por %p56, %p57
      %p59 = scmp.ne.s32.totalorder %s45, %s46
      %p60 = scmp.eq.s32.totalorder %s17, 1
      %p61 = por %p59, %p60
      %p63 = scmp.ne.s32.totalorder %s46, %s62
      %p64 = scmp.eq.s32.totalorder %s17, 0
      %p65 = por %p63, %p64
      %s66 = ssub.s32 %s11, %s18
      %p67 = scmp.eq.s32.totalorder %s66, 0
      %s69 = sadd.s32 %s68, 1
      %s70 = scalar_select %p67, %s68, %s69
      %p73 = pneg %p67
      %p74 = scmp.eq.s32.totalorder %s11, 1
      %p75 = por %p73, %p74
      %p76 = scmp.ne.s32.totalorder %s68, %s71
      %p77 = scmp.eq.s32.totalorder %s11, 0
      %p78 = por %p76, %p77
      %p79 = scmp.ne.s32.totalorder %s68, %s71
      %p80 = scmp.eq.s32.totalorder %s16, 1
      %p81 = por %p79, %p80
      %p82 = scmp.ne.s32.totalorder %s71, %s72
      %p83 = scmp.eq.s32.totalorder %s16, 0
      %p84 = por %p82, %p83
      %p85 = scmp.ne.s32.totalorder %s71, %s72
      %p86 = scmp.eq.s32.totalorder %s17, 1
      %p87 = por %p85, %p86
      %p89 = scmp.ne.s32.totalorder %s72, %s88
      %p90 = scmp.eq.s32.totalorder %s17, 0
      %p91 = por %p89, %p90
      %p92 = scmp.le.s32.totalorder 1, %s11
      %p93 = scmp.lt.s32.totalorder %s11, 3
      %p94 = pnand %p92, %p93
      %p95 = pneg %p94
      // Predicated region
      $region9: #{tpu_custom_call.1} parent=5 // pred_check
        _
      $region10: #{tpu_custom_call.1} parent=5 // pred_check_branch
        %97 = sbr.rel (%p94) target = $region12
      $region11: #{tpu_custom_call.1} parent=5 // pred_region
        %s98 = ssub.s32 %s11, 1
        // Predicated region
        $region13: #{tpu_custom_call.1} parent=11 // pred_check
          %p99 = pneg %p32
        $region14: #{tpu_custom_call.1} parent=11 // pred_check_branch
          %101 = sbr.rel (%p99) target = $region16
        $region15: #{tpu_custom_call.1} parent=11 // pred_region
          _
        $region16: #{tpu_custom_call.1} parent=11 // pred_fallthru
          _
      $region12: #{tpu_custom_call.1} parent=5 // pred_fallthru
        _
      %p102 = scmp.lt.s32.totalorder %s11, 2
      // Predicated region
      $region17: #{tpu_custom_call.1} parent=5 // pred_check
        %p103 = pneg %p102
      $region18: #{tpu_custom_call.1} parent=5 // pred_check_branch
        %105 = sbr.rel (%p103) target = $region20
      $region19: #{tpu_custom_call.1} parent=5 // pred_region
        // Predicated region
        $region21: #{tpu_custom_call.1} parent=19 // pred_check
          %p106 = pneg %p52
        $region22: #{tpu_custom_call.1} parent=19 // pred_check_branch
          %108 = sbr.rel (%p106) target = $region24
        $region23: #{tpu_custom_call.1} parent=19 // pred_region
          %p109 = scmp.lt.s32.totalorder %s11, 1
          %s110 = scalar_select %p109, %s11, 1
          %s111 = smul.addr %s110, 128
          %s112 = smul.addr %s111, 8
          %s113 = scalar_lea.vmem %s1, %s112
        $region24: #{tpu_custom_call.1} parent=19 // pred_fallthru
          _
      $region20: #{tpu_custom_call.1} parent=5 // pred_fallthru
        _
      %p114 = scmp.le.s32.totalorder 1, %s11
      %p115 = scmp.lt.s32.totalorder %s11, 3
      %p116 = pnand %p114, %p115
      %p117 = pneg %p116
      // Predicated region
      $region25: #{tpu_custom_call.1} parent=5 // pred_check
        _
      $region26: #{tpu_custom_call.1} parent=5 // pred_check_branch
        %119 = sbr.rel (%p116) target = $region28
      $region27: #{tpu_custom_call.1} parent=5 // pred_region
        %s120 = ssub.s32 %s11, 1
        %p121 = pneg %p32
        %p122 = pneg %p29
        %p123 = scmp.lt.s32.totalorder %s16, 1
        %s124 = scalar_select %p123, %s16, 1
        %s125 = smul.addr %s124, 128
        %s126 = smul.addr %s125, 8
        %s127 = scalar_lea.vmem %s1, %s126
        %p128 = pneg %p58
        %p129 = pneg %p55
        %p130 = pneg %p84
        %p131 = pneg %p81
        %s132 = sand.u32 %s71, 1
        %s133 = scalar_lea.sflag [#allocation3], %s132
        %s134 = sand.u32 %s71, 1
        %s135 = smul.addr %s134, 256
        %s136 = scalar_lea.vmem [#allocation2], %s135
        %p137 = scmp.lt.s32.totalorder %s16, 1
        %s138 = scalar_select %p137, %s16, 1
        %s139 = smul.addr %s138, 128
        %s140 = smul.addr %s139, 8
        %s141 = scalar_lea.vmem %s1, %s140
        %v142 = vld [vmem:[%s0] sm:$0xff]
        %v143 = vld [vmem:[%s141] sm:$0xff]
        %v144 = vld [vmem:[%s141 + $0x8] sm:$0xff]
        %v145 = vld [vmem:[%s141 + $0x10] sm:$0xff]
        %v146 = vld [vmem:[%s141 + $0x18] sm:$0xff]
        %v147 = vld [vmem:[%s141 + $0x20] sm:$0xff]
        %v148 = vld [vmem:[%s141 + $0x28] sm:$0xff]
        %v149 = vld [vmem:[%s141 + $0x30] sm:$0xff]
        %v150 = vld [vmem:[%s141 + $0x38] sm:$0xff]
        %v151 = vld [vmem:[%s141 + $0x40] sm:$0xff]
        %v152 = vld [vmem:[%s141 + $0x48] sm:$0xff]
        %v153 = vld [vmem:[%s141 + $0x50] sm:$0xff]
        %v154 = vld [vmem:[%s141 + $0x58] sm:$0xff]
        %v155 = vld [vmem:[%s141 + $0x60] sm:$0xff]
        %v156 = vld [vmem:[%s141 + $0x68] sm:$0xff]
        %v157 = vld [vmem:[%s141 + $0x70] sm:$0xff]
        %v158 = vld [vmem:[%s141 + $0x78] sm:$0xff]
        %v159 = vld [vmem:[%s141 + $0x80] sm:$0xff]
        %v160 = vld [vmem:[%s141 + $0x88] sm:$0xff]
        %v161 = vld [vmem:[%s141 + $0x90] sm:$0xff]
        %v162 = vld [vmem:[%s141 + $0x98] sm:$0xff]
        %v163 = vld [vmem:[%s141 + $0xa0] sm:$0xff]
        %v164 = vld [vmem:[%s141 + $0xa8] sm:$0xff]
        %v165 = vld [vmem:[%s141 + $0xb0] sm:$0xff]
        %v166 = vld [vmem:[%s141 + $0xb8] sm:$0xff]
        %v167 = vld [vmem:[%s141 + $0xc0] sm:$0xff]
        %v168 = vld [vmem:[%s141 + $0xc8] sm:$0xff]
        %v169 = vld [vmem:[%s141 + $0xd0] sm:$0xff]
        %v170 = vld [vmem:[%s141 + $0xd8] sm:$0xff]
        %v171 = vld [vmem:[%s141 + $0xe0] sm:$0xff]
        %v172 = vld [vmem:[%s141 + $0xe8] sm:$0xff]
        %v173 = vld [vmem:[%s141 + $0xf0] sm:$0xff]
        %v174 = vld [vmem:[%s141 + $0xf8] sm:$0xff]
        %v175 = vld [vmem:[%s141 + $0x100] sm:$0xff]
        %v176 = vld [vmem:[%s141 + $0x108] sm:$0xff]
        %v177 = vld [vmem:[%s141 + $0x110] sm:$0xff]
        %v178 = vld [vmem:[%s141 + $0x118] sm:$0xff]
        %v179 = vld [vmem:[%s141 + $0x120] sm:$0xff]
        %v180 = vld [vmem:[%s141 + $0x128] sm:$0xff]
        %v181 = vld [vmem:[%s141 + $0x130] sm:$0xff]
        %v182 = vld [vmem:[%s141 + $0x138] sm:$0xff]
        %v183 = vld [vmem:[%s141 + $0x140] sm:$0xff]
        %v184 = vld [vmem:[%s141 + $0x148] sm:$0xff]
        %v185 = vld [vmem:[%s141 + $0x150] sm:$0xff]
        %v186 = vld [vmem:[%s141 + $0x158] sm:$0xff]
        %v187 = vld [vmem:[%s141 + $0x160] sm:$0xff]
        %v188 = vld [vmem:[%s141 + $0x168] sm:$0xff]
        %v189 = vld [vmem:[%s141 + $0x170] sm:$0xff]
        %v190 = vld [vmem:[%s141 + $0x178] sm:$0xff]
        %v191 = vld [vmem:[%s141 + $0x180] sm:$0xff]
        %v192 = vld [vmem:[%s141 + $0x188] sm:$0xff]
        %v193 = vld [vmem:[%s141 + $0x190] sm:$0xff]
        %v194 = vld [vmem:[%s141 + $0x198] sm:$0xff]
        %v195 = vld [vmem:[%s141 + $0x1a0] sm:$0xff]
        %v196 = vld [vmem:[%s141 + $0x1a8] sm:$0xff]
        %v197 = vld [vmem:[%s141 + $0x1b0] sm:$0xff]
        %v198 = vld [vmem:[%s141 + $0x1b8] sm:$0xff]
        %v199 = vld [vmem:[%s141 + $0x1c0] sm:$0xff]
        %v200 = vld [vmem:[%s141 + $0x1c8] sm:$0xff]
        %v201 = vld [vmem:[%s141 + $0x1d0] sm:$0xff]
        %v202 = vld [vmem:[%s141 + $0x1d8] sm:$0xff]
        %v203 = vld [vmem:[%s141 + $0x1e0] sm:$0xff]
        %v204 = vld [vmem:[%s141 + $0x1e8] sm:$0xff]
        %v205 = vld [vmem:[%s141 + $0x1f0] sm:$0xff]
        %v206 = vld [vmem:[%s141 + $0x1f8] sm:$0xff]
        %v207 = vld [vmem:[%s141 + $0x200] sm:$0xff]
        %v208 = vld [vmem:[%s141 + $0x208] sm:$0xff]
        %v209 = vld [vmem:[%s141 + $0x210] sm:$0xff]
        %v210 = vld [vmem:[%s141 + $0x218] sm:$0xff]
        %v211 = vld [vmem:[%s141 + $0x220] sm:$0xff]
        %v212 = vld [vmem:[%s141 + $0x228] sm:$0xff]
        %v213 = vld [vmem:[%s141 + $0x230] sm:$0xff]
        %v214 = vld [vmem:[%s141 + $0x238] sm:$0xff]
        %v215 = vld [vmem:[%s141 + $0x240] sm:$0xff]
        %v216 = vld [vmem:[%s141 + $0x248] sm:$0xff]
        %v217 = vld [vmem:[%s141 + $0x250] sm:$0xff]
        %v218 = vld [vmem:[%s141 + $0x258] sm:$0xff]
        %v219 = vld [vmem:[%s141 + $0x260] sm:$0xff]
        %v220 = vld [vmem:[%s141 + $0x268] sm:$0xff]
        %v221 = vld [vmem:[%s141 + $0x270] sm:$0xff]
        %v222 = vld [vmem:[%s141 + $0x278] sm:$0xff]
        %v223 = vld [vmem:[%s141 + $0x280] sm:$0xff]
        %v224 = vld [vmem:[%s141 + $0x288] sm:$0xff]
        %v225 = vld [vmem:[%s141 + $0x290] sm:$0xff]
        %v226 = vld [vmem:[%s141 + $0x298] sm:$0xff]
        %v227 = vld [vmem:[%s141 + $0x2a0] sm:$0xff]
        %v228 = vld [vmem:[%s141 + $0x2a8] sm:$0xff]
        %v229 = vld [vmem:[%s141 + $0x2b0] sm:$0xff]
        %v230 = vld [vmem:[%s141 + $0x2b8] sm:$0xff]
        %v231 = vld [vmem:[%s141 + $0x2c0] sm:$0xff]
        %v232 = vld [vmem:[%s141 + $0x2c8] sm:$0xff]
        %v233 = vld [vmem:[%s141 + $0x2d0] sm:$0xff]
        %v234 = vld [vmem:[%s141 + $0x2d8] sm:$0xff]
        %v235 = vld [vmem:[%s141 + $0x2e0] sm:$0xff]
        %v236 = vld [vmem:[%s141 + $0x2e8] sm:$0xff]
        %v237 = vld [vmem:[%s141 + $0x2f0] sm:$0xff]
        %v238 = vld [vmem:[%s141 + $0x2f8] sm:$0xff]
        %v239 = vld [vmem:[%s141 + $0x300] sm:$0x7]
        %v240 = vld [vmem:[%s141 + $0x308] sm:$0x7]
        %v241 = vld [vmem:[%s141 + $0x310] sm:$0x7]
        %v242 = vld [vmem:[%s141 + $0x318] sm:$0x7]
        %v243 = vld [vmem:[%s141 + $0x320] sm:$0x7]
        %v244 = vld [vmem:[%s141 + $0x328] sm:$0x7]
        %v245 = vld [vmem:[%s141 + $0x330] sm:$0x7]
        %v246 = vld [vmem:[%s141 + $0x338] sm:$0x7]
        %v247 = vld [vmem:[%s141 + $0x340] sm:$0x7]
        %v248 = vld [vmem:[%s141 + $0x348] sm:$0x7]
        %v249 = vld [vmem:[%s141 + $0x350] sm:$0x7]
        %v250 = vld [vmem:[%s141 + $0x358] sm:$0x7]
        %v251 = vld [vmem:[%s141 + $0x360] sm:$0x7]
        %v252 = vld [vmem:[%s141 + $0x368] sm:$0x7]
        %v253 = vld [vmem:[%s141 + $0x370] sm:$0x7]
        %v254 = vld [vmem:[%s141 + $0x378] sm:$0x7]
        %v255 = vld [vmem:[%s141 + $0x380] sm:$0x7]
        %v256 = vld [vmem:[%s141 + $0x388] sm:$0x7]
        %v257 = vld [vmem:[%s141 + $0x390] sm:$0x7]
        %v258 = vld [vmem:[%s141 + $0x398] sm:$0x7]
        %v259 = vld [vmem:[%s141 + $0x3a0] sm:$0x7]
        %v260 = vld [vmem:[%s141 + $0x3a8] sm:$0x7]
        %v261 = vld [vmem:[%s141 + $0x3b0] sm:$0x7]
        %v262 = vld [vmem:[%s141 + $0x3b8] sm:$0x7]
        %v263 = vld [vmem:[%s141 + $0x3c0] sm:$0x7]
        %v264 = vld [vmem:[%s141 + $0x3c8] sm:$0x7]
        %v265 = vld [vmem:[%s141 + $0x3d0] sm:$0x7]
        %v266 = vld [vmem:[%s141 + $0x3d8] sm:$0x7]
        %v267 = vld [vmem:[%s141 + $0x3e0] sm:$0x7]
        %v268 = vld [vmem:[%s141 + $0x3e8] sm:$0x7]
        %v269 = vld [vmem:[%s141 + $0x3f0] sm:$0x7]
        %v270 = vld [vmem:[%s141 + $0x3f8] sm:$0x7]
        %vm271 = vcmask 220160
        %v273 = vsel %vm271, %v142, 0
        %vm275 = vcmask 1042432
        %v277 = vsel %vm275, %v239, 0
        %v280 = vsel %vm275, %v240, 0
        %v283 = vsel %vm275, %v241, 0
        %v286 = vsel %vm275, %v242, 0
        %v289 = vsel %vm275, %v243, 0
        %v292 = vsel %vm275, %v244, 0
        %v295 = vsel %vm275, %v245, 0
        %v298 = vsel %vm275, %v246, 0
        %v301 = vsel %vm275, %v247, 0
        %v304 = vsel %vm275, %v248, 0
        %v307 = vsel %vm275, %v249, 0
        %v310 = vsel %vm275, %v250, 0
        %v313 = vsel %vm275, %v251, 0
        %v316 = vsel %vm275, %v252, 0
        %v319 = vsel %vm275, %v253, 0
        %v322 = vsel %vm275, %v254, 0
        %v325 = vsel %vm275, %v255, 0
        %v328 = vsel %vm275, %v256, 0
        %v331 = vsel %vm275, %v257, 0
        %v334 = vsel %vm275, %v258, 0
        %v337 = vsel %vm275, %v259, 0
        %v340 = vsel %vm275, %v260, 0
        %v343 = vsel %vm275, %v261, 0
        %v346 = vsel %vm275, %v262, 0
        %v349 = vsel %vm275, %v263, 0
        %v352 = vsel %vm275, %v264, 0
        %v355 = vsel %vm275, %v265, 0
        %v358 = vsel %vm275, %v266, 0
        %v361 = vsel %vm275, %v267, 0
        %v364 = vsel %vm275, %v268, 0
        %v367 = vsel %vm275, %v269, 0
        %v370 = vsel %vm275, %v270, 0
        %372 = vmatpush.msra.mxu0 0.0
        %373 = vmatpush.msra.mxu0 0.0
        %374 = vmatpush.msra.mxu0 0.0
        %375 = vmatpush.msra.mxu0 0.0
        %376 = vmatpush.msra.mxu0 0.0
        %377 = vmatpush.msra.mxu0 0.0
        %378 = vmatpush.msra.mxu0 0.0
        %379 = vmatpush.msra.mxu0 0.0
        %380 = vmatpush.msra.mxu0 0.0
        %381 = vmatpush.msra.mxu0 0.0
        %382 = vmatpush.msra.mxu0 0.0
        %383 = vmatpush.msra.mxu0 0.0
        %384 = vmatpush.msra.mxu0 %v277
        %385 = vmatpush.msra.mxu0 %v207
        %386 = vmatpush.msra.mxu0 %v175
        %387 = vmatpush.msra.mxu0 %v143
        %388 = vmatmul.f32.gmra.mxu0 %v273
        %v389 = vpop.f32.mrf.mxu0
        %v390 = vadd.f32 0.0, %v389
        %391 = vdwg.mxu0
        %392 = vmatpush.msra.mxu0 0.0
        %393 = vmatpush.msra.mxu0 0.0
        %394 = vmatpush.msra.mxu0 0.0
        %395 = vmatpush.msra.mxu0 0.0
        %396 = vmatpush.msra.mxu0 0.0
        %397 = vmatpush.msra.mxu0 0.0
        %398 = vmatpush.msra.mxu0 0.0
        %399 = vmatpush.msra.mxu0 0.0
        %400 = vmatpush.msra.mxu0 0.0
        %401 = vmatpush.msra.mxu0 0.0
        %402 = vmatpush.msra.mxu0 0.0
        %403 = vmatpush.msra.mxu0 0.0
        %404 = vmatpush.msra.mxu0 %v280
        %405 = vmatpush.msra.mxu0 %v208
        %406 = vmatpush.msra.mxu0 %v176
        %407 = vmatpush.msra.mxu0 %v144
        %408 = vmatmul.f32.gmra.mxu0 %v273
        %v409 = vpop.f32.mrf.mxu0
        %v410 = vadd.f32 0.0, %v409
        %411 = vdwg.mxu0
        %412 = vmatpush.msra.mxu0 0.0
        %413 = vmatpush.msra.mxu0 0.0
        %414 = vmatpush.msra.mxu0 0.0
        %415 = vmatpush.msra.mxu0 0.0
        %416 = vmatpush.msra.mxu0 0.0
        %417 = vmatpush.msra.mxu0 0.0
        %418 = vmatpush.msra.mxu0 0.0
        %419 = vmatpush.msra.mxu0 0.0
        %420 = vmatpush.msra.mxu0 0.0
        %421 = vmatpush.msra.mxu0 0.0
        %422 = vmatpush.msra.mxu0 0.0
        %423 = vmatpush.msra.mxu0 0.0
        %424 = vmatpush.msra.mxu0 %v283
        %425 = vmatpush.msra.mxu0 %v209
        %426 = vmatpush.msra.mxu0 %v177
        %427 = vmatpush.msra.mxu0 %v145
        %428 = vmatmul.f32.gmra.mxu0 %v273
        %v429 = vpop.f32.mrf.mxu0
        %v430 = vadd.f32 0.0, %v429
        %431 = vdwg.mxu0
        %432 = vmatpush.msra.mxu0 0.0
        %433 = vmatpush.msra.mxu0 0.0
        %434 = vmatpush.msra.mxu0 0.0
        %435 = vmatpush.msra.mxu0 0.0
        %436 = vmatpush.msra.mxu0 0.0
        %437 = vmatpush.msra.mxu0 0.0
        %438 = vmatpush.msra.mxu0 0.0
        %439 = vmatpush.msra.mxu0 0.0
        %440 = vmatpush.msra.mxu0 0.0
        %441 = vmatpush.msra.mxu0 0.0
        %442 = vmatpush.msra.mxu0 0.0
        %443 = vmatpush.msra.mxu0 0.0
        %444 = vmatpush.msra.mxu0 %v286
        %445 = vmatpush.msra.mxu0 %v210
        %446 = vmatpush.msra.mxu0 %v178
        %447 = vmatpush.msra.mxu0 %v146
        %448 = vmatmul.f32.gmra.mxu0 %v273
        %v449 = vpop.f32.mrf.mxu0
        %v450 = vadd.f32 0.0, %v449
        %451 = vdwg.mxu0
        %452 = vmatpush.msra.mxu0 0.0
        %453 = vmatpush.msra.mxu0 0.0
        %454 = vmatpush.msra.mxu0 0.0
        %455 = vmatpush.msra.mxu0 0.0
        %456 = vmatpush.msra.mxu0 0.0
        %457 = vmatpush.msra.mxu0 0.0
        %458 = vmatpush.msra.mxu0 0.0
        %459 = vmatpush.msra.mxu0 0.0
        %460 = vmatpush.msra.mxu0 0.0
        %461 = vmatpush.msra.mxu0 0.0
        %462 = vmatpush.msra.mxu0 0.0
        %463 = vmatpush.msra.mxu0 0.0
        %464 = vmatpush.msra.mxu0 %v289
        %465 = vmatpush.msra.mxu0 %v211
        %466 = vmatpush.msra.mxu0 %v179
        %467 = vmatpush.msra.mxu0 %v147
        %468 = vmatmul.f32.gmra.mxu0 %v273
        %v469 = vpop.f32.mrf.mxu0
        %v470 = vadd.f32 0.0, %v469
        %471 = vdwg.mxu0
        %472 = vmatpush.msra.mxu0 0.0
        %473 = vmatpush.msra.mxu0 0.0
        %474 = vmatpush.msra.mxu0 0.0
        %475 = vmatpush.msra.mxu0 0.0
        %476 = vmatpush.msra.mxu0 0.0
        %477 = vmatpush.msra.mxu0 0.0
        %478 = vmatpush.msra.mxu0 0.0
        %479 = vmatpush.msra.mxu0 0.0
        %480 = vmatpush.msra.mxu0 0.0
        %481 = vmatpush.msra.mxu0 0.0
        %482 = vmatpush.msra.mxu0 0.0
        %483 = vmatpush.msra.mxu0 0.0
        %484 = vmatpush.msra.mxu0 %v292
        %485 = vmatpush.msra.mxu0 %v212
        %486 = vmatpush.msra.mxu0 %v180
        %487 = vmatpush.msra.mxu0 %v148
        %488 = vmatmul.f32.gmra.mxu0 %v273
        %v489 = vpop.f32.mrf.mxu0
        %v490 = vadd.f32 0.0, %v489
        %491 = vdwg.mxu0
        %492 = vmatpush.msra.mxu0 0.0
        %493 = vmatpush.msra.mxu0 0.0
        %494 = vmatpush.msra.mxu0 0.0
        %495 = vmatpush.msra.mxu0 0.0
        %496 = vmatpush.msra.mxu0 0.0
        %497 = vmatpush.msra.mxu0 0.0
        %498 = vmatpush.msra.mxu0 0.0
        %499 = vmatpush.msra.mxu0 0.0
        %500 = vmatpush.msra.mxu0 0.0
        %501 = vmatpush.msra.mxu0 0.0
        %502 = vmatpush.msra.mxu0 0.0
        %503 = vmatpush.msra.mxu0 0.0
        %504 = vmatpush.msra.mxu0 %v295
        %505 = vmatpush.msra.mxu0 %v213
        %506 = vmatpush.msra.mxu0 %v181
        %507 = vmatpush.msra.mxu0 %v149
        %508 = vmatmul.f32.gmra.mxu0 %v273
        %v509 = vpop.f32.mrf.mxu0
        %v510 = vadd.f32 0.0, %v509
        %511 = vdwg.mxu0
        %512 = vmatpush.msra.mxu0 0.0
        %513 = vmatpush.msra.mxu0 0.0
        %514 = vmatpush.msra.mxu0 0.0
        %515 = vmatpush.msra.mxu0 0.0
        %516 = vmatpush.msra.mxu0 0.0
        %517 = vmatpush.msra.mxu0 0.0
        %518 = vmatpush.msra.mxu0 0.0
        %519 = vmatpush.msra.mxu0 0.0
        %520 = vmatpush.msra.mxu0 0.0
        %521 = vmatpush.msra.mxu0 0.0
        %522 = vmatpush.msra.mxu0 0.0
        %523 = vmatpush.msra.mxu0 0.0
        %524 = vmatpush.msra.mxu0 %v298
        %525 = vmatpush.msra.mxu0 %v214
        %526 = vmatpush.msra.mxu0 %v182
        %527 = vmatpush.msra.mxu0 %v150
        %528 = vmatmul.f32.gmra.mxu0 %v273
        %v529 = vpop.f32.mrf.mxu0
        %v530 = vadd.f32 0.0, %v529
        %531 = vdwg.mxu0
        %532 = vmatpush.msra.mxu0 0.0
        %533 = vmatpush.msra.mxu0 0.0
        %534 = vmatpush.msra.mxu0 0.0
        %535 = vmatpush.msra.mxu0 0.0
        %536 = vmatpush.msra.mxu0 0.0
        %537 = vmatpush.msra.mxu0 0.0
        %538 = vmatpush.msra.mxu0 0.0
        %539 = vmatpush.msra.mxu0 0.0
        %540 = vmatpush.msra.mxu0 0.0
        %541 = vmatpush.msra.mxu0 0.0
        %542 = vmatpush.msra.mxu0 0.0
        %543 = vmatpush.msra.mxu0 0.0
        %544 = vmatpush.msra.mxu0 %v301
        %545 = vmatpush.msra.mxu0 %v215
        %546 = vmatpush.msra.mxu0 %v183
        %547 = vmatpush.msra.mxu0 %v151
        %548 = vmatmul.f32.gmra.mxu0 %v273
        %v549 = vpop.f32.mrf.mxu0
        %v550 = vadd.f32 0.0, %v549
        %551 = vdwg.mxu0
        %552 = vmatpush.msra.mxu0 0.0
        %553 = vmatpush.msra.mxu0 0.0
        %554 = vmatpush.msra.mxu0 0.0
        %555 = vmatpush.msra.mxu0 0.0
        %556 = vmatpush.msra.mxu0 0.0
        %557 = vmatpush.msra.mxu0 0.0
        %558 = vmatpush.msra.mxu0 0.0
        %559 = vmatpush.msra.mxu0 0.0
        %560 = vmatpush.msra.mxu0 0.0
        %561 = vmatpush.msra.mxu0 0.0
        %562 = vmatpush.msra.mxu0 0.0
        %563 = vmatpush.msra.mxu0 0.0
        %564 = vmatpush.msra.mxu0 %v304
        %565 = vmatpush.msra.mxu0 %v216
        %566 = vmatpush.msra.mxu0 %v184
        %567 = vmatpush.msra.mxu0 %v152
        %568 = vmatmul.f32.gmra.mxu0 %v273
        %v569 = vpop.f32.mrf.mxu0
        %v570 = vadd.f32 0.0, %v569
        %571 = vdwg.mxu0
        %572 = vmatpush.msra.mxu0 0.0
        %573 = vmatpush.msra.mxu0 0.0
        %574 = vmatpush.msra.mxu0 0.0
        %575 = vmatpush.msra.mxu0 0.0
        %576 = vmatpush.msra.mxu0 0.0
        %577 = vmatpush.msra.mxu0 0.0
        %578 = vmatpush.msra.mxu0 0.0
        %579 = vmatpush.msra.mxu0 0.0
        %580 = vmatpush.msra.mxu0 0.0
        %581 = vmatpush.msra.mxu0 0.0
        %582 = vmatpush.msra.mxu0 0.0
        %583 = vmatpush.msra.mxu0 0.0
        %584 = vmatpush.msra.mxu0 %v307
        %585 = vmatpush.msra.mxu0 %v217
        %586 = vmatpush.msra.mxu0 %v185
        %587 = vmatpush.msra.mxu0 %v153
        %588 = vmatmul.f32.gmra.mxu0 %v273
        %v589 = vpop.f32.mrf.mxu0
        %v590 = vadd.f32 0.0, %v589
        %591 = vdwg.mxu0
        %592 = vmatpush.msra.mxu0 0.0
        %593 = vmatpush.msra.mxu0 0.0
        %594 = vmatpush.msra.mxu0 0.0
        %595 = vmatpush.msra.mxu0 0.0
        %596 = vmatpush.msra.mxu0 0.0
        %597 = vmatpush.msra.mxu0 0.0
        %598 = vmatpush.msra.mxu0 0.0
        %599 = vmatpush.msra.mxu0 0.0
        %600 = vmatpush.msra.mxu0 0.0
        %601 = vmatpush.msra.mxu0 0.0
        %602 = vmatpush.msra.mxu0 0.0
        %603 = vmatpush.msra.mxu0 0.0
        %604 = vmatpush.msra.mxu0 %v310
        %605 = vmatpush.msra.mxu0 %v218
        %606 = vmatpush.msra.mxu0 %v186
        %607 = vmatpush.msra.mxu0 %v154
        %608 = vmatmul.f32.gmra.mxu0 %v273
        %v609 = vpop.f32.mrf.mxu0
        %v610 = vadd.f32 0.0, %v609
        %611 = vdwg.mxu0
        %612 = vmatpush.msra.mxu0 0.0
        %613 = vmatpush.msra.mxu0 0.0
        %614 = vmatpush.msra.mxu0 0.0
        %615 = vmatpush.msra.mxu0 0.0
        %616 = vmatpush.msra.mxu0 0.0
        %617 = vmatpush.msra.mxu0 0.0
        %618 = vmatpush.msra.mxu0 0.0
        %619 = vmatpush.msra.mxu0 0.0
        %620 = vmatpush.msra.mxu0 0.0
        %621 = vmatpush.msra.mxu0 0.0
        %622 = vmatpush.msra.mxu0 0.0
        %623 = vmatpush.msra.mxu0 0.0
        %624 = vmatpush.msra.mxu0 %v313
        %625 = vmatpush.msra.mxu0 %v219
        %626 = vmatpush.msra.mxu0 %v187
        %627 = vmatpush.msra.mxu0 %v155
        %628 = vmatmul.f32.gmra.mxu0 %v273
        %v629 = vpop.f32.mrf.mxu0
        %v630 = vadd.f32 0.0, %v629
        %631 = vdwg.mxu0
        %632 = vmatpush.msra.mxu0 0.0
        %633 = vmatpush.msra.mxu0 0.0
        %634 = vmatpush.msra.mxu0 0.0
        %635 = vmatpush.msra.mxu0 0.0
        %636 = vmatpush.msra.mxu0 0.0
        %637 = vmatpush.msra.mxu0 0.0
        %638 = vmatpush.msra.mxu0 0.0
        %639 = vmatpush.msra.mxu0 0.0
        %640 = vmatpush.msra.mxu0 0.0
        %641 = vmatpush.msra.mxu0 0.0
        %642 = vmatpush.msra.mxu0 0.0
        %643 = vmatpush.msra.mxu0 0.0
        %644 = vmatpush.msra.mxu0 %v316
        %645 = vmatpush.msra.mxu0 %v220
        %646 = vmatpush.msra.mxu0 %v188
        %647 = vmatpush.msra.mxu0 %v156
        %648 = vmatmul.f32.gmra.mxu0 %v273
        %v649 = vpop.f32.mrf.mxu0
        %v650 = vadd.f32 0.0, %v649
        %651 = vdwg.mxu0
        %652 = vmatpush.msra.mxu0 0.0
        %653 = vmatpush.msra.mxu0 0.0
        %654 = vmatpush.msra.mxu0 0.0
        %655 = vmatpush.msra.mxu0 0.0
        %656 = vmatpush.msra.mxu0 0.0
        %657 = vmatpush.msra.mxu0 0.0
        %658 = vmatpush.msra.mxu0 0.0
        %659 = vmatpush.msra.mxu0 0.0
        %660 = vmatpush.msra.mxu0 0.0
        %661 = vmatpush.msra.mxu0 0.0
        %662 = vmatpush.msra.mxu0 0.0
        %663 = vmatpush.msra.mxu0 0.0
        %664 = vmatpush.msra.mxu0 %v319
        %665 = vmatpush.msra.mxu0 %v221
        %666 = vmatpush.msra.mxu0 %v189
        %667 = vmatpush.msra.mxu0 %v157
        %668 = vmatmul.f32.gmra.mxu0 %v273
        %v669 = vpop.f32.mrf.mxu0
        %v670 = vadd.f32 0.0, %v669
        %671 = vdwg.mxu0
        %672 = vmatpush.msra.mxu0 0.0
        %673 = vmatpush.msra.mxu0 0.0
        %674 = vmatpush.msra.mxu0 0.0
        %675 = vmatpush.msra.mxu0 0.0
        %676 = vmatpush.msra.mxu0 0.0
        %677 = vmatpush.msra.mxu0 0.0
        %678 = vmatpush.msra.mxu0 0.0
        %679 = vmatpush.msra.mxu0 0.0
        %680 = vmatpush.msra.mxu0 0.0
        %681 = vmatpush.msra.mxu0 0.0
        %682 = vmatpush.msra.mxu0 0.0
        %683 = vmatpush.msra.mxu0 0.0
        %684 = vmatpush.msra.mxu0 %v322
        %685 = vmatpush.msra.mxu0 %v222
        %686 = vmatpush.msra.mxu0 %v190
        %687 = vmatpush.msra.mxu0 %v158
        %688 = vmatmul.f32.gmra.mxu0 %v273
        %v689 = vpop.f32.mrf.mxu0
        %v690 = vadd.f32 0.0, %v689
        %691 = vdwg.mxu0
        %692 = vmatpush.msra.mxu0 0.0
        %693 = vmatpush.msra.mxu0 0.0
        %694 = vmatpush.msra.mxu0 0.0
        %695 = vmatpush.msra.mxu0 0.0
        %696 = vmatpush.msra.mxu0 0.0
        %697 = vmatpush.msra.mxu0 0.0
        %698 = vmatpush.msra.mxu0 0.0
        %699 = vmatpush.msra.mxu0 0.0
        %700 = vmatpush.msra.mxu0 0.0
        %701 = vmatpush.msra.mxu0 0.0
        %702 = vmatpush.msra.mxu0 0.0
        %703 = vmatpush.msra.mxu0 0.0
        %704 = vmatpush.msra.mxu0 %v325
        %705 = vmatpush.msra.mxu0 %v223
        %706 = vmatpush.msra.mxu0 %v191
        %707 = vmatpush.msra.mxu0 %v159
        %708 = vmatmul.f32.gmra.mxu0 %v273
        %v709 = vpop.f32.mrf.mxu0
        %v710 = vadd.f32 0.0, %v709
        %711 = vdwg.mxu0
        %712 = vmatpush.msra.mxu0 0.0
        %713 = vmatpush.msra.mxu0 0.0
        %714 = vmatpush.msra.mxu0 0.0
        %715 = vmatpush.msra.mxu0 0.0
        %716 = vmatpush.msra.mxu0 0.0
        %717 = vmatpush.msra.mxu0 0.0
        %718 = vmatpush.msra.mxu0 0.0
        %719 = vmatpush.msra.mxu0 0.0
        %720 = vmatpush.msra.mxu0 0.0
        %721 = vmatpush.msra.mxu0 0.0
        %722 = vmatpush.msra.mxu0 0.0
        %723 = vmatpush.msra.mxu0 0.0
        %724 = vmatpush.msra.mxu0 %v328
        %725 = vmatpush.msra.mxu0 %v224
        %726 = vmatpush.msra.mxu0 %v192
        %727 = vmatpush.msra.mxu0 %v160
        %728 = vmatmul.f32.gmra.mxu0 %v273
        %v729 = vpop.f32.mrf.mxu0
        %v730 = vadd.f32 0.0, %v729
        %731 = vdwg.mxu0
        %732 = vmatpush.msra.mxu0 0.0
        %733 = vmatpush.msra.mxu0 0.0
        %734 = vmatpush.msra.mxu0 0.0
        %735 = vmatpush.msra.mxu0 0.0
        %736 = vmatpush.msra.mxu0 0.0
        %737 = vmatpush.msra.mxu0 0.0
        %738 = vmatpush.msra.mxu0 0.0
        %739 = vmatpush.msra.mxu0 0.0
        %740 = vmatpush.msra.mxu0 0.0
        %741 = vmatpush.msra.mxu0 0.0
        %742 = vmatpush.msra.mxu0 0.0
        %743 = vmatpush.msra.mxu0 0.0
        %744 = vmatpush.msra.mxu0 %v331
        %745 = vmatpush.msra.mxu0 %v225
        %746 = vmatpush.msra.mxu0 %v193
        %747 = vmatpush.msra.mxu0 %v161
        %748 = vmatmul.f32.gmra.mxu0 %v273
        %v749 = vpop.f32.mrf.mxu0
        %v750 = vadd.f32 0.0, %v749
        %751 = vdwg.mxu0
        %752 = vmatpush.msra.mxu0 0.0
        %753 = vmatpush.msra.mxu0 0.0
        %754 = vmatpush.msra.mxu0 0.0
        %755 = vmatpush.msra.mxu0 0.0
        %756 = vmatpush.msra.mxu0 0.0
        %757 = vmatpush.msra.mxu0 0.0
        %758 = vmatpush.msra.mxu0 0.0
        %759 = vmatpush.msra.mxu0 0.0
        %760 = vmatpush.msra.mxu0 0.0
        %761 = vmatpush.msra.mxu0 0.0
        %762 = vmatpush.msra.mxu0 0.0
        %763 = vmatpush.msra.mxu0 0.0
        %764 = vmatpush.msra.mxu0 %v334
        %765 = vmatpush.msra.mxu0 %v226
        %766 = vmatpush.msra.mxu0 %v194
        %767 = vmatpush.msra.mxu0 %v162
        %768 = vmatmul.f32.gmra.mxu0 %v273
        %v769 = vpop.f32.mrf.mxu0
        %v770 = vadd.f32 0.0, %v769
        %771 = vdwg.mxu0
        %772 = vmatpush.msra.mxu0 0.0
        %773 = vmatpush.msra.mxu0 0.0
        %774 = vmatpush.msra.mxu0 0.0
        %775 = vmatpush.msra.mxu0 0.0
        %776 = vmatpush.msra.mxu0 0.0
        %777 = vmatpush.msra.mxu0 0.0
        %778 = vmatpush.msra.mxu0 0.0
        %779 = vmatpush.msra.mxu0 0.0
        %780 = vmatpush.msra.mxu0 0.0
        %781 = vmatpush.msra.mxu0 0.0
        %782 = vmatpush.msra.mxu0 0.0
        %783 = vmatpush.msra.mxu0 0.0
        %784 = vmatpush.msra.mxu0 %v337
        %785 = vmatpush.msra.mxu0 %v227
        %786 = vmatpush.msra.mxu0 %v195
        %787 = vmatpush.msra.mxu0 %v163
        %788 = vmatmul.f32.gmra.mxu0 %v273
        %v789 = vpop.f32.mrf.mxu0
        %v790 = vadd.f32 0.0, %v789
        %791 = vdwg.mxu0
        %792 = vmatpush.msra.mxu0 0.0
        %793 = vmatpush.msra.mxu0 0.0
        %794 = vmatpush.msra.mxu0 0.0
        %795 = vmatpush.msra.mxu0 0.0
        %796 = vmatpush.msra.mxu0 0.0
        %797 = vmatpush.msra.mxu0 0.0
        %798 = vmatpush.msra.mxu0 0.0
        %799 = vmatpush.msra.mxu0 0.0
        %800 = vmatpush.msra.mxu0 0.0
        %801 = vmatpush.msra.mxu0 0.0
        %802 = vmatpush.msra.mxu0 0.0
        %803 = vmatpush.msra.mxu0 0.0
        %804 = vmatpush.msra.mxu0 %v340
        %805 = vmatpush.msra.mxu0 %v228
        %806 = vmatpush.msra.mxu0 %v196
        %807 = vmatpush.msra.mxu0 %v164
        %808 = vmatmul.f32.gmra.mxu0 %v273
        %v809 = vpop.f32.mrf.mxu0
        %v810 = vadd.f32 0.0, %v809
        %811 = vdwg.mxu0
        %812 = vmatpush.msra.mxu0 0.0
        %813 = vmatpush.msra.mxu0 0.0
        %814 = vmatpush.msra.mxu0 0.0
        %815 = vmatpush.msra.mxu0 0.0
        %816 = vmatpush.msra.mxu0 0.0
        %817 = vmatpush.msra.mxu0 0.0
        %818 = vmatpush.msra.mxu0 0.0
        %819 = vmatpush.msra.mxu0 0.0
        %820 = vmatpush.msra.mxu0 0.0
        %821 = vmatpush.msra.mxu0 0.0
        %822 = vmatpush.msra.mxu0 0.0
        %823 = vmatpush.msra.mxu0 0.0
        %824 = vmatpush.msra.mxu0 %v343
        %825 = vmatpush.msra.mxu0 %v229
        %826 = vmatpush.msra.mxu0 %v197
        %827 = vmatpush.msra.mxu0 %v165
        %828 = vmatmul.f32.gmra.mxu0 %v273
        %v829 = vpop.f32.mrf.mxu0
        %v830 = vadd.f32 0.0, %v829
        %831 = vdwg.mxu0
        %832 = vmatpush.msra.mxu0 0.0
        %833 = vmatpush.msra.mxu0 0.0
        %834 = vmatpush.msra.mxu0 0.0
        %835 = vmatpush.msra.mxu0 0.0
        %836 = vmatpush.msra.mxu0 0.0
        %837 = vmatpush.msra.mxu0 0.0
        %838 = vmatpush.msra.mxu0 0.0
        %839 = vmatpush.msra.mxu0 0.0
        %840 = vmatpush.msra.mxu0 0.0
        %841 = vmatpush.msra.mxu0 0.0
        %842 = vmatpush.msra.mxu0 0.0
        %843 = vmatpush.msra.mxu0 0.0
        %844 = vmatpush.msra.mxu0 %v346
        %845 = vmatpush.msra.mxu0 %v230
        %846 = vmatpush.msra.mxu0 %v198
        %847 = vmatpush.msra.mxu0 %v166
        %848 = vmatmul.f32.gmra.mxu0 %v273
        %v849 = vpop.f32.mrf.mxu0
        %v850 = vadd.f32 0.0, %v849
        %851 = vdwg.mxu0
        %852 = vmatpush.msra.mxu0 0.0
        %853 = vmatpush.msra.mxu0 0.0
        %854 = vmatpush.msra.mxu0 0.0
        %855 = vmatpush.msra.mxu0 0.0
        %856 = vmatpush.msra.mxu0 0.0
        %857 = vmatpush.msra.mxu0 0.0
        %858 = vmatpush.msra.mxu0 0.0
        %859 = vmatpush.msra.mxu0 0.0
        %860 = vmatpush.msra.mxu0 0.0
        %861 = vmatpush.msra.mxu0 0.0
        %862 = vmatpush.msra.mxu0 0.0
        %863 = vmatpush.msra.mxu0 0.0
        %864 = vmatpush.msra.mxu0 %v349
        %865 = vmatpush.msra.mxu0 %v231
        %866 = vmatpush.msra.mxu0 %v199
        %867 = vmatpush.msra.mxu0 %v167
        %868 = vmatmul.f32.gmra.mxu0 %v273
        %v869 = vpop.f32.mrf.mxu0
        %v870 = vadd.f32 0.0, %v869
        %871 = vdwg.mxu0
        %872 = vmatpush.msra.mxu0 0.0
        %873 = vmatpush.msra.mxu0 0.0
        %874 = vmatpush.msra.mxu0 0.0
        %875 = vmatpush.msra.mxu0 0.0
        %876 = vmatpush.msra.mxu0 0.0
        %877 = vmatpush.msra.mxu0 0.0
        %878 = vmatpush.msra.mxu0 0.0
        %879 = vmatpush.msra.mxu0 0.0
        %880 = vmatpush.msra.mxu0 0.0
        %881 = vmatpush.msra.mxu0 0.0
        %882 = vmatpush.msra.mxu0 0.0
        %883 = vmatpush.msra.mxu0 0.0
        %884 = vmatpush.msra.mxu0 %v352
        %885 = vmatpush.msra.mxu0 %v232
        %886 = vmatpush.msra.mxu0 %v200
        %887 = vmatpush.msra.mxu0 %v168
        %888 = vmatmul.f32.gmra.mxu0 %v273
        %v889 = vpop.f32.mrf.mxu0
        %v890 = vadd.f32 0.0, %v889
        %891 = vdwg.mxu0
        %892 = vmatpush.msra.mxu0 0.0
        %893 = vmatpush.msra.mxu0 0.0
        %894 = vmatpush.msra.mxu0 0.0
        %895 = vmatpush.msra.mxu0 0.0
        %896 = vmatpush.msra.mxu0 0.0
        %897 = vmatpush.msra.mxu0 0.0
        %898 = vmatpush.msra.mxu0 0.0
        %899 = vmatpush.msra.mxu0 0.0
        %900 = vmatpush.msra.mxu0 0.0
        %901 = vmatpush.msra.mxu0 0.0
        %902 = vmatpush.msra.mxu0 0.0
        %903 = vmatpush.msra.mxu0 0.0
        %904 = vmatpush.msra.mxu0 %v355
        %905 = vmatpush.msra.mxu0 %v233
        %906 = vmatpush.msra.mxu0 %v201
        %907 = vmatpush.msra.mxu0 %v169
        %908 = vmatmul.f32.gmra.mxu0 %v273
        %v909 = vpop.f32.mrf.mxu0
        %v910 = vadd.f32 0.0, %v909
        %911 = vdwg.mxu0
        %912 = vmatpush.msra.mxu0 0.0
        %913 = vmatpush.msra.mxu0 0.0
        %914 = vmatpush.msra.mxu0 0.0
        %915 = vmatpush.msra.mxu0 0.0
        %916 = vmatpush.msra.mxu0 0.0
        %917 = vmatpush.msra.mxu0 0.0
        %918 = vmatpush.msra.mxu0 0.0
        %919 = vmatpush.msra.mxu0 0.0
        %920 = vmatpush.msra.mxu0 0.0
        %921 = vmatpush.msra.mxu0 0.0
        %922 = vmatpush.msra.mxu0 0.0
        %923 = vmatpush.msra.mxu0 0.0
        %924 = vmatpush.msra.mxu0 %v358
        %925 = vmatpush.msra.mxu0 %v234
        %926 = vmatpush.msra.mxu0 %v202
        %927 = vmatpush.msra.mxu0 %v170
        %928 = vmatmul.f32.gmra.mxu0 %v273
        %v929 = vpop.f32.mrf.mxu0
        %v930 = vadd.f32 0.0, %v929
        %931 = vdwg.mxu0
        %932 = vmatpush.msra.mxu0 0.0
        %933 = vmatpush.msra.mxu0 0.0
        %934 = vmatpush.msra.mxu0 0.0
        %935 = vmatpush.msra.mxu0 0.0
        %936 = vmatpush.msra.mxu0 0.0
        %937 = vmatpush.msra.mxu0 0.0
        %938 = vmatpush.msra.mxu0 0.0
        %939 = vmatpush.msra.mxu0 0.0
        %940 = vmatpush.msra.mxu0 0.0
        %941 = vmatpush.msra.mxu0 0.0
        %942 = vmatpush.msra.mxu0 0.0
        %943 = vmatpush.msra.mxu0 0.0
        %944 = vmatpush.msra.mxu0 %v361
        %945 = vmatpush.msra.mxu0 %v235
        %946 = vmatpush.msra.mxu0 %v203
        %947 = vmatpush.msra.mxu0 %v171
        %948 = vmatmul.f32.gmra.mxu0 %v273
        %v949 = vpop.f32.mrf.mxu0
        %v950 = vadd.f32 0.0, %v949
        %951 = vdwg.mxu0
        %952 = vmatpush.msra.mxu0 0.0
        %953 = vmatpush.msra.mxu0 0.0
        %954 = vmatpush.msra.mxu0 0.0
        %955 = vmatpush.msra.mxu0 0.0
        %956 = vmatpush.msra.mxu0 0.0
        %957 = vmatpush.msra.mxu0 0.0
        %958 = vmatpush.msra.mxu0 0.0
        %959 = vmatpush.msra.mxu0 0.0
        %960 = vmatpush.msra.mxu0 0.0
        %961 = vmatpush.msra.mxu0 0.0
        %962 = vmatpush.msra.mxu0 0.0
        %963 = vmatpush.msra.mxu0 0.0
        %964 = vmatpush.msra.mxu0 %v364
        %965 = vmatpush.msra.mxu0 %v236
        %966 = vmatpush.msra.mxu0 %v204
        %967 = vmatpush.msra.mxu0 %v172
        %968 = vmatmul.f32.gmra.mxu0 %v273
        %v969 = vpop.f32.mrf.mxu0
        %v970 = vadd.f32 0.0, %v969
        %971 = vdwg.mxu0
        %972 = vmatpush.msra.mxu0 0.0
        %973 = vmatpush.msra.mxu0 0.0
        %974 = vmatpush.msra.mxu0 0.0
        %975 = vmatpush.msra.mxu0 0.0
        %976 = vmatpush.msra.mxu0 0.0
        %977 = vmatpush.msra.mxu0 0.0
        %978 = vmatpush.msra.mxu0 0.0
        %979 = vmatpush.msra.mxu0 0.0
        %980 = vmatpush.msra.mxu0 0.0
        %981 = vmatpush.msra.mxu0 0.0
        %982 = vmatpush.msra.mxu0 0.0
        %983 = vmatpush.msra.mxu0 0.0
        %984 = vmatpush.msra.mxu0 %v367
        %985 = vmatpush.msra.mxu0 %v237
        %986 = vmatpush.msra.mxu0 %v205
        %987 = vmatpush.msra.mxu0 %v173
        %988 = vmatmul.f32.gmra.mxu0 %v273
        %v989 = vpop.f32.mrf.mxu0
        %v990 = vadd.f32 0.0, %v989
        %991 = vdwg.mxu0
        %992 = vmatpush.msra.mxu0 0.0
        %993 = vmatpush.msra.mxu0 0.0
        %994 = vmatpush.msra.mxu0 0.0
        %995 = vmatpush.msra.mxu0 0.0
        %996 = vmatpush.msra.mxu0 0.0
        %997 = vmatpush.msra.mxu0 0.0
        %998 = vmatpush.msra.mxu0 0.0
        %999 = vmatpush.msra.mxu0 0.0
        %1000 = vmatpush.msra.mxu0 0.0
        %1001 = vmatpush.msra.mxu0 0.0
        %1002 = vmatpush.msra.mxu0 0.0
        %1003 = vmatpush.msra.mxu0 0.0
        %1004 = vmatpush.msra.mxu0 %v370
        %1005 = vmatpush.msra.mxu0 %v238
        %1006 = vmatpush.msra.mxu0 %v206
        %1007 = vmatpush.msra.mxu0 %v174
        %1008 = vmatmul.f32.gmra.mxu0 %v273
        %v1009 = vpop.f32.mrf.mxu0
        %v1010 = vadd.f32 0.0, %v1009
        %1011 = vdwg.mxu0
        %v1012 = vadd.f32 %v390, %v410
        %v1013 = vadd.f32 %v1012, %v430
        %v1014 = vadd.f32 %v1013, %v450
        %v1015 = vadd.f32 %v1014, %v470
        %v1016 = vadd.f32 %v1015, %v490
        %v1017 = vadd.f32 %v1016, %v510
        %v1018 = vadd.f32 %v1017, %v530
        %v1019 = vadd.f32 %v1018, %v550
        %v1020 = vadd.f32 %v1019, %v570
        %v1021 = vadd.f32 %v1020, %v590
        %v1022 = vadd.f32 %v1021, %v610
        %v1023 = vadd.f32 %v1022, %v630
        %v1024 = vadd.f32 %v1023, %v650
        %v1025 = vadd.f32 %v1024, %v670
        %v1026 = vadd.f32 %v1025, %v690
        %v1027 = vadd.f32 %v1026, %v710
        %v1028 = vadd.f32 %v1027, %v730
        %v1029 = vadd.f32 %v1028, %v750
        %v1030 = vadd.f32 %v1029, %v770
        %v1031 = vadd.f32 %v1030, %v790
        %v1032 = vadd.f32 %v1031, %v810
        %v1033 = vadd.f32 %v1032, %v830
        %v1034 = vadd.f32 %v1033, %v850
        %v1035 = vadd.f32 %v1034, %v870
        %v1036 = vadd.f32 %v1035, %v890
        %v1037 = vadd.f32 %v1036, %v910
        %v1038 = vadd.f32 %v1037, %v930
        %v1039 = vadd.f32 %v1038, %v950
        %v1040 = vadd.f32 %v1039, %v970
        %v1041 = vadd.f32 %v1040, %v990
        %v1042 = vadd.f32 %v1041, %v1010
        %1043 = vadd.xlane.f32.xlu0 %v1042
        %v1044 = vpop.xlane.xlu0 %1043
        %v1045 = vmul.f32 %v390, %v390
        %v1046 = vmul.f32 %v410, %v410
        %v1047 = vmul.f32 %v430, %v430
        %v1048 = vmul.f32 %v450, %v450
        %v1049 = vmul.f32 %v470, %v470
        %v1050 = vmul.f32 %v490, %v490
        %v1051 = vmul.f32 %v510, %v510
        %v1052 = vmul.f32 %v530, %v530
        %v1053 = vmul.f32 %v550, %v550
        %v1054 = vmul.f32 %v570, %v570
        %v1055 = vmul.f32 %v590, %v590
        %v1056 = vmul.f32 %v610, %v610
        %v1057 = vmul.f32 %v630, %v630
        %v1058 = vmul.f32 %v650, %v650
        %v1059 = vmul.f32 %v670, %v670
        %v1060 = vmul.f32 %v690, %v690
        %v1061 = vmul.f32 %v710, %v710
        %v1062 = vmul.f32 %v730, %v730
        %v1063 = vmul.f32 %v750, %v750
        %v1064 = vmul.f32 %v770, %v770
        %v1065 = vmul.f32 %v790, %v790
        %v1066 = vmul.f32 %v810, %v810
        %v1067 = vmul.f32 %v830, %v830
        %v1068 = vmul.f32 %v850, %v850
        %v1069 = vmul.f32 %v870, %v870
        %v1070 = vmul.f32 %v890, %v890
        %v1071 = vmul.f32 %v910, %v910
        %v1072 = vmul.f32 %v930, %v930
        %v1073 = vmul.f32 %v950, %v950
        %v1074 = vmul.f32 %v970, %v970
        %v1075 = vmul.f32 %v990, %v990
        %v1076 = vmul.f32 %v1010, %v1010
        %v1077 = vadd.f32 %v1045, %v1046
        %v1078 = vadd.f32 %v1077, %v1047
        %v1079 = vadd.f32 %v1078, %v1048
        %v1080 = vadd.f32 %v1079, %v1049
        %v1081 = vadd.f32 %v1080, %v1050
        %v1082 = vadd.f32 %v1081, %v1051
        %v1083 = vadd.f32 %v1082, %v1052
        %v1084 = vadd.f32 %v1083, %v1053
        %v1085 = vadd.f32 %v1084, %v1054
        %v1086 = vadd.f32 %v1085, %v1055
        %v1087 = vadd.f32 %v1086, %v1056
        %v1088 = vadd.f32 %v1087, %v1057
        %v1089 = vadd.f32 %v1088, %v1058
        %v1090 = vadd.f32 %v1089, %v1059
        %v1091 = vadd.f32 %v1090, %v1060
        %v1092 = vadd.f32 %v1091, %v1061
        %v1093 = vadd.f32 %v1092, %v1062
        %v1094 = vadd.f32 %v1093, %v1063
        %v1095 = vadd.f32 %v1094, %v1064
        %v1096 = vadd.f32 %v1095, %v1065
        %v1097 = vadd.f32 %v1096, %v1066
        %v1098 = vadd.f32 %v1097, %v1067
        %v1099 = vadd.f32 %v1098, %v1068
        %v1100 = vadd.f32 %v1099, %v1069
        %v1101 = vadd.f32 %v1100, %v1070
        %v1102 = vadd.f32 %v1101, %v1071
        %v1103 = vadd.f32 %v1102, %v1072
        %v1104 = vadd.f32 %v1103, %v1073
        %v1105 = vadd.f32 %v1104, %v1074
        %v1106 = vadd.f32 %v1105, %v1075
        %v1107 = vadd.f32 %v1106, %v1076
        %1108 = vadd.xlane.f32.xlu0 %v1107
        %v1109 = vpop.xlane.xlu0 %1108
        %v1110 = vmul.f32 %v1044, 0.00024414063
        %v1111 = vmul.f32 %v1109, 0.00024414063
        %v1112 = vmul.f32 %v1110, %v1110
        %v1113 = vsub.f32 %v1111, %v1112
        %v1114 = vmax.f32 %v1113, 0.0
        %v1115 = vsub.f32 %v390, %v1110
        %v1116 = vsub.f32 %v410, %v1110
        %v1117 = vsub.f32 %v430, %v1110
        %v1118 = vsub.f32 %v450, %v1110
        %v1119 = vsub.f32 %v470, %v1110
        %v1120 = vsub.f32 %v490, %v1110
        %v1121 = vsub.f32 %v510, %v1110
        %v1122 = vsub.f32 %v530, %v1110
        %v1123 = vsub.f32 %v550, %v1110
        %v1124 = vsub.f32 %v570, %v1110
        %v1125 = vsub.f32 %v590, %v1110
        %v1126 = vsub.f32 %v610, %v1110
        %v1127 = vsub.f32 %v630, %v1110
        %v1128 = vsub.f32 %v650, %v1110
        %v1129 = vsub.f32 %v670, %v1110
        %v1130 = vsub.f32 %v690, %v1110
        %v1131 = vsub.f32 %v710, %v1110
        %v1132 = vsub.f32 %v730, %v1110
        %v1133 = vsub.f32 %v750, %v1110
        %v1134 = vsub.f32 %v770, %v1110
        %v1135 = vsub.f32 %v790, %v1110
        %v1136 = vsub.f32 %v810, %v1110
        %v1137 = vsub.f32 %v830, %v1110
        %v1138 = vsub.f32 %v850, %v1110
        %v1139 = vsub.f32 %v870, %v1110
        %v1140 = vsub.f32 %v890, %v1110
        %v1141 = vsub.f32 %v910, %v1110
        %v1142 = vsub.f32 %v930, %v1110
        %v1143 = vsub.f32 %v950, %v1110
        %v1144 = vsub.f32 %v970, %v1110
        %v1145 = vsub.f32 %v990, %v1110
        %v1146 = vsub.f32 %v1010, %v1110
        %v1147 = vadd.f32 %v1114, 1e-05
        %v1148 = vrsqrt.pop %v1147
        %v1149 = vmul.f32 %v1148, %v1147
        %v1150 = vmul.f32 %v1149, %v1148
        %v1151 = vmul.f32 0.5, %v1150
        %v1152 = vsub.f32 1.5, %v1151
        %v1153 = vmul.f32 %v1148, %v1152
        %vm1154 = vweird.f32 %v1147
        %vm1155 = vweird.f32 %v1148
        %vm1156 = vmor %vm1154, %vm1155
        %v1157 = vsel %vm1156, %v1148, %v1153
        %v1158 = vmul.f32 %v1115, %v1157
        %v1159 = vmul.f32 %v1116, %v1157
        %v1160 = vmul.f32 %v1117, %v1157
        %v1161 = vmul.f32 %v1118, %v1157
        %v1162 = vmul.f32 %v1119, %v1157
        %v1163 = vmul.f32 %v1120, %v1157
        %v1164 = vmul.f32 %v1121, %v1157
        %v1165 = vmul.f32 %v1122, %v1157
        %v1166 = vmul.f32 %v1123, %v1157
        %v1167 = vmul.f32 %v1124, %v1157
        %v1168 = vmul.f32 %v1125, %v1157
        %v1169 = vmul.f32 %v1126, %v1157
        %v1170 = vmul.f32 %v1127, %v1157
        %v1171 = vmul.f32 %v1128, %v1157
        %v1172 = vmul.f32 %v1129, %v1157
        %v1173 = vmul.f32 %v1130, %v1157
        %v1174 = vmul.f32 %v1131, %v1157
        %v1175 = vmul.f32 %v1132, %v1157
        %v1176 = vmul.f32 %v1133, %v1157
        %v1177 = vmul.f32 %v1134, %v1157
        %v1178 = vmul.f32 %v1135, %v1157
        %v1179 = vmul.f32 %v1136, %v1157
        %v1180 = vmul.f32 %v1137, %v1157
        %v1181 = vmul.f32 %v1138, %v1157
        %v1182 = vmul.f32 %v1139, %v1157
        %v1183 = vmul.f32 %v1140, %v1157
        %v1184 = vmul.f32 %v1141, %v1157
        %v1185 = vmul.f32 %v1142, %v1157
        %v1186 = vmul.f32 %v1143, %v1157
        %v1187 = vmul.f32 %v1144, %v1157
        %v1188 = vmul.f32 %v1145, %v1157
        %v1189 = vmul.f32 %v1146, %v1157
        %vm1190 = vcmp.ge.f32.partialorder %v1158, 0.0
        %vm1191 = vcmp.ge.f32.partialorder %v1159, 0.0
        %vm1192 = vcmp.ge.f32.partialorder %v1160, 0.0
        %vm1193 = vcmp.ge.f32.partialorder %v1161, 0.0
        %vm1194 = vcmp.ge.f32.partialorder %v1162, 0.0
        %vm1195 = vcmp.ge.f32.partialorder %v1163, 0.0
        %vm1196 = vcmp.ge.f32.partialorder %v1164, 0.0
        %vm1197 = vcmp.ge.f32.partialorder %v1165, 0.0
        %vm1198 = vcmp.ge.f32.partialorder %v1166, 0.0
        %vm1199 = vcmp.ge.f32.partialorder %v1167, 0.0
        %vm1200 = vcmp.ge.f32.partialorder %v1168, 0.0
        %vm1201 = vcmp.ge.f32.partialorder %v1169, 0.0
        %vm1202 = vcmp.ge.f32.partialorder %v1170, 0.0
        %vm1203 = vcmp.ge.f32.partialorder %v1171, 0.0
        %vm1204 = vcmp.ge.f32.partialorder %v1172, 0.0
        %vm1205 = vcmp.ge.f32.partialorder %v1173, 0.0
        %vm1206 = vcmp.ge.f32.partialorder %v1174, 0.0
        %vm1207 = vcmp.ge.f32.partialorder %v1175, 0.0
        %vm1208 = vcmp.ge.f32.partialorder %v1176, 0.0
        %vm1209 = vcmp.ge.f32.partialorder %v1177, 0.0
        %vm1210 = vcmp.ge.f32.partialorder %v1178, 0.0
        %vm1211 = vcmp.ge.f32.partialorder %v1179, 0.0
        %vm1212 = vcmp.ge.f32.partialorder %v1180, 0.0
        %vm1213 = vcmp.ge.f32.partialorder %v1181, 0.0
        %vm1214 = vcmp.ge.f32.partialorder %v1182, 0.0
        %vm1215 = vcmp.ge.f32.partialorder %v1183, 0.0
        %vm1216 = vcmp.ge.f32.partialorder %v1184, 0.0
        %vm1217 = vcmp.ge.f32.partialorder %v1185, 0.0
        %vm1218 = vcmp.ge.f32.partialorder %v1186, 0.0
        %vm1219 = vcmp.ge.f32.partialorder %v1187, 0.0
        %vm1220 = vcmp.ge.f32.partialorder %v1188, 0.0
        %vm1221 = vcmp.ge.f32.partialorder %v1189, 0.0
        %v1222 = vmul.f32 %v1158, 0.01
        %v1223 = vmul.f32 %v1159, 0.01
        %v1224 = vmul.f32 %v1160, 0.01
        %v1225 = vmul.f32 %v1161, 0.01
        %v1226 = vmul.f32 %v1162, 0.01
        %v1227 = vmul.f32 %v1163, 0.01
        %v1228 = vmul.f32 %v1164, 0.01
        %v1229 = vmul.f32 %v1165, 0.01
        %v1230 = vmul.f32 %v1166, 0.01
        %v1231 = vmul.f32 %v1167, 0.01
        %v1232 = vmul.f32 %v1168, 0.01
        %v1233 = vmul.f32 %v1169, 0.01
        %v1234 = vmul.f32 %v1170, 0.01
        %v1235 = vmul.f32 %v1171, 0.01
        %v1236 = vmul.f32 %v1172, 0.01
        %v1237 = vmul.f32 %v1173, 0.01
        %v1238 = vmul.f32 %v1174, 0.01
        %v1239 = vmul.f32 %v1175, 0.01
        %v1240 = vmul.f32 %v1176, 0.01
        %v1241 = vmul.f32 %v1177, 0.01
        %v1242 = vmul.f32 %v1178, 0.01
        %v1243 = vmul.f32 %v1179, 0.01
        %v1244 = vmul.f32 %v1180, 0.01
        %v1245 = vmul.f32 %v1181, 0.01
        %v1246 = vmul.f32 %v1182, 0.01
        %v1247 = vmul.f32 %v1183, 0.01
        %v1248 = vmul.f32 %v1184, 0.01
        %v1249 = vmul.f32 %v1185, 0.01
        %v1250 = vmul.f32 %v1186, 0.01
        %v1251 = vmul.f32 %v1187, 0.01
        %v1252 = vmul.f32 %v1188, 0.01
        %v1253 = vmul.f32 %v1189, 0.01
        %v1254 = vsel %vm1190, %v1158, %v1222
        %v1255 = vsel %vm1191, %v1159, %v1223
        %v1256 = vsel %vm1192, %v1160, %v1224
        %v1257 = vsel %vm1193, %v1161, %v1225
        %v1258 = vsel %vm1194, %v1162, %v1226
        %v1259 = vsel %vm1195, %v1163, %v1227
        %v1260 = vsel %vm1196, %v1164, %v1228
        %v1261 = vsel %vm1197, %v1165, %v1229
        %v1262 = vsel %vm1198, %v1166, %v1230
        %v1263 = vsel %vm1199, %v1167, %v1231
        %v1264 = vsel %vm1200, %v1168, %v1232
        %v1265 = vsel %vm1201, %v1169, %v1233
        %v1266 = vsel %vm1202, %v1170, %v1234
        %v1267 = vsel %vm1203, %v1171, %v1235
        %v1268 = vsel %vm1204, %v1172, %v1236
        %v1269 = vsel %vm1205, %v1173, %v1237
        %v1270 = vsel %vm1206, %v1174, %v1238
        %v1271 = vsel %vm1207, %v1175, %v1239
        %v1272 = vsel %vm1208, %v1176, %v1240
        %v1273 = vsel %vm1209, %v1177, %v1241
        %v1274 = vsel %vm1210, %v1178, %v1242
        %v1275 = vsel %vm1211, %v1179, %v1243
        %v1276 = vsel %vm1212, %v1180, %v1244
        %v1277 = vsel %vm1213, %v1181, %v1245
        %v1278 = vsel %vm1214, %v1182, %v1246
        %v1279 = vsel %vm1215, %v1183, %v1247
        %v1280 = vsel %vm1216, %v1184, %v1248
        %v1281 = vsel %vm1217, %v1185, %v1249
        %v1282 = vsel %vm1218, %v1186, %v1250
        %v1283 = vsel %vm1219, %v1187, %v1251
        %v1284 = vsel %vm1220, %v1188, %v1252
        %v1285 = vsel %vm1221, %v1189, %v1253
        %1286 = vst [vmem:[%s136] sm:$0xff] %v1254
        %1287 = vst [vmem:[%s136 + $0x8] sm:$0xff] %v1255
        %1288 = vst [vmem:[%s136 + $0x10] sm:$0xff] %v1256
        %1289 = vst [vmem:[%s136 + $0x18] sm:$0xff] %v1257
        %1290 = vst [vmem:[%s136 + $0x20] sm:$0xff] %v1258
        %1291 = vst [vmem:[%s136 + $0x28] sm:$0xff] %v1259
        %1292 = vst [vmem:[%s136 + $0x30] sm:$0xff] %v1260
        %1293 = vst [vmem:[%s136 + $0x38] sm:$0xff] %v1261
        %1294 = vst [vmem:[%s136 + $0x40] sm:$0xff] %v1262
        %1295 = vst [vmem:[%s136 + $0x48] sm:$0xff] %v1263
        %1296 = vst [vmem:[%s136 + $0x50] sm:$0xff] %v1264
        %1297 = vst [vmem:[%s136 + $0x58] sm:$0xff] %v1265
        %1298 = vst [vmem:[%s136 + $0x60] sm:$0xff] %v1266
        %1299 = vst [vmem:[%s136 + $0x68] sm:$0xff] %v1267
        %1300 = vst [vmem:[%s136 + $0x70] sm:$0xff] %v1268
        %1301 = vst [vmem:[%s136 + $0x78] sm:$0xff] %v1269
        %1302 = vst [vmem:[%s136 + $0x80] sm:$0xff] %v1270
        %1303 = vst [vmem:[%s136 + $0x88] sm:$0xff] %v1271
        %1304 = vst [vmem:[%s136 + $0x90] sm:$0xff] %v1272
        %1305 = vst [vmem:[%s136 + $0x98] sm:$0xff] %v1273
        %1306 = vst [vmem:[%s136 + $0xa0] sm:$0xff] %v1274
        %1307 = vst [vmem:[%s136 + $0xa8] sm:$0xff] %v1275
        %1308 = vst [vmem:[%s136 + $0xb0] sm:$0xff] %v1276
        %1309 = vst [vmem:[%s136 + $0xb8] sm:$0xff] %v1277
        %1310 = vst [vmem:[%s136 + $0xc0] sm:$0xff] %v1278
        %1311 = vst [vmem:[%s136 + $0xc8] sm:$0xff] %v1279
        %1312 = vst [vmem:[%s136 + $0xd0] sm:$0xff] %v1280
        %1313 = vst [vmem:[%s136 + $0xd8] sm:$0xff] %v1281
        %1314 = vst [vmem:[%s136 + $0xe0] sm:$0xff] %v1282
        %1315 = vst [vmem:[%s136 + $0xe8] sm:$0xff] %v1283
        %1316 = vst [vmem:[%s136 + $0xf0] sm:$0xff] %v1284
        %1317 = vst [vmem:[%s136 + $0xf8] sm:$0xff] %v1285
        %s1318 = sand.u32 %s71, 1
        %s1319 = scalar_lea.sflag [#allocation3], %s1318
        %s1320 = sand.u32 %s71, 1
        %s1321 = smul.addr %s1320, 256
        %s1322 = scalar_lea.vmem [#allocation2], %s1321
        // Predicated region
        $region29: #{tpu_custom_call.1} parent=27 // pred_check
          %p1323 = pneg %p81
        $region30: #{tpu_custom_call.1} parent=27 // pred_check_branch
          %1325 = sbr.rel (%p1323) target = $region32
        $region31: #{tpu_custom_call.1} parent=27 // pred_region
          %1327 = vsyncadd %s1319, 0
          %s1328 = smul.addr %s16, 32
          %s1329 = smul.addr %s1328, 8
          %s1330 = scalar_lea.hbm %s2, %s1329
          %s1332 = sshll.u32 %s1322, 4
          %s1333 = int_to_ptr.vmem [resolvable:$true] %s1332
          %s1334 = sshll.u32 %s1330, 4
          %s1335 = int_to_ptr.hbm [resolvable:$true] %s1334
          %1337 = dma.vmem_to_hbm [thread:$0]  %s1333, 4096, %s1335, %s1319
        $region32: #{tpu_custom_call.1} parent=27 // pred_fallthru
          _
      $region28: #{tpu_custom_call.1} parent=5 // pred_fallthru
        _
      %p1338 = scmp.le.s32.totalorder 2, %s11
      // Predicated region
      $region33: #{tpu_custom_call.1} parent=5 // pred_check
        %p1339 = pneg %p1338
      $region34: #{tpu_custom_call.1} parent=5 // pred_check_branch
        %1341 = sbr.rel (%p1339) target = $region36
      $region35: #{tpu_custom_call.1} parent=5 // pred_region
        %s1342 = ssub.s32 %s11, 2
        // Predicated region
        $region37: #{tpu_custom_call.1} parent=35 // pred_check
          %p1343 = pneg %p87
        $region38: #{tpu_custom_call.1} parent=35 // pred_check_branch
          %1345 = sbr.rel (%p1343) target = $region40
        $region39: #{tpu_custom_call.1} parent=35 // pred_region
          %s1346 = sand.u32 %s72, 1
          %s1347 = scalar_lea.sflag [#allocation3], %s1346
          %s1348 = sand.u32 %s72, 1
          %s1349 = smul.addr %s1348, 256
          %s1350 = scalar_lea.vmem [#allocation2], %s1349
          %1352 = dma.done %s1347, 4096
        $region40: #{tpu_custom_call.1} parent=35 // pred_fallthru
          _
      $region36: #{tpu_custom_call.1} parent=5 // pred_fallthru
        _
    $region6: #{tpu_custom_call.1} parent=1 // loop_footer
      %s15 = sadd.s32 1, %s11
    $region7: #{tpu_custom_call.1} parent=1 // loop_footer_branch
      %10 = sbr.rel target = $region3
    $region8: #{tpu_custom_call.1} parent=1 // loop_exit
      _
    %1353 = vsyncpa [#allocation3], 1
    %s1354 = scalar_lea.sflag [#allocation3], 1
    %1355 = vsyncpa %s1354, 1

</llo_original>
